<compile_context>
chip_gen: v5e
topology: v5e:2x2
jax: 0.10.0
libtpu: 0.0.40
codegen_flags: <defaults>
</compile_context>

<pallas_src>
import functools

import jax
import jax.numpy as jnp
from jax.experimental import pallas as pl
from jax.experimental.pallas import tpu as pltpu


def _round_up(x, m):
    return ((x + m - 1) // m) * m


def _block_diag(m, p):
    """[r, c] -> [p*r, p*c] with `m` repeated along the diagonal (host-side)."""
    if p == 1:
        return m
    r, c = m.shape
    out = jnp.zeros((p * r, p * c), m.dtype)
    for k in range(p):
        out = out.at[k * r:(k + 1) * r, k * c:(k + 1) * c].set(m)
    return out


def _link_predictor_kernel(num_layers, xi_ref, xj_ref, *refs):
    # refs = (w0, b0, ..., w_{L-2}, b_{L-2}, w_lastT, b_lastT, out_ref)
    out_ref = refs[-1]
    params = refs[:-1]

    # Elementwise product in the storage dtype (bf16 runs on the native bf16
    # VALU on v6e/v7x; Mosaic upcasts transparently on v5e).
    x = xi_ref[...] * xj_ref[...]

    # Hidden layers: Linear -> ReLU (dropout == identity at inference).
    # MXU operands stay in the (bf16) weight dtype; accumulation is f32.
    for layer in range(num_layers - 1):
        w = params[2 * layer][...]          # [P*d_in, P*d_out] (block diagonal)
        b = params[2 * layer + 1][...]      # [1, P*d_out] f32
        h = jnp.dot(x, w, preferred_element_type=jnp.float32) + b
        x = jnp.maximum(h, 0.0).astype(w.dtype)

    # Final layer in transposed form so the stored block is lane-dense
    # [P*C_out, tile] rather than a [tile, C_out] column of masked stores.
    w_last = params[-2][...]                # [P*C_out, P*d_hidden]
    b_last = params[-1][...]                # [P*C_out, 1] f32
    out_t = jax.lax.dot_general(
        w_last, x,
        dimension_numbers=(((1,), (1,)), ((), ())),
        preferred_element_type=jnp.float32,
    ) + b_last                              # [P*C_out, tile]
    out_ref[...] = out_t.astype(out_ref.dtype)


def link_predictor_forward(x_i, x_j, weights, biases, *, tile_rows=None,
                           out_dtype=jnp.float32):
    """Fused MLP link predictor.

    x_i, x_j : [N, in_channels]  (f32 or bf16; bf16 recommended for bandwidth)
    weights  : list of [out_features, in_features] arrays (PyTorch layout)
    biases   : list of [out_features] arrays
    Returns  : [N, out_channels] in `out_dtype` (f32 by default).
    """
    N, c_in = x_i.shape
    num_layers = len(weights)
    c_out = int(weights[-1].shape[0])
    # Keep the whole datapath (and MXU operands) in the input dtype.
    param_dtype = x_i.dtype

    # ---- Lane packing ------------------------------------------------------
    widths = [c_in] + [int(w.shape[0]) for w in weights]
    max_w = max(widths)
    if max_w < 128 and 128 % max_w == 0 and N % (128 // max_w) == 0:
        pack = 128 // max_w
    else:
        # TODO(synk): when N % pack != 0 a remainder-split would keep the
        # packed path; fall back to the (lane-sparse) unpacked layout instead.
        pack = 1

    n_pack = N // pack
    xi_p = x_i.reshape(n_pack, pack * c_in)     # free, contiguous reshape
    xj_p = x_j.reshape(n_pack, pack * c_in)

    # ---- Row tiling --------------------------------------------------------
    # tile is a multiple of 128 so the transposed output block is lane-dense.
    # Cap of 8192 packed rows (= 32K logical rows at pack==4) keeps per-step
    # HBM traffic well above the ~0.35us grid-step overhead while per-step
    # VMEM stays ~20 MiB (safe on v7x's 64 MiB physical VMEM).
    cap_pack = 8192
    if tile_rows is not None:
        cap_pack = max(128, _round_up(pl.cdiv(int(tile_rows), pack), 128))
    tile = min(cap_pack, _round_up(n_pack, 128))
    # Keep at least two grid steps for large inputs so v7x megacore can shard.
    if pl.cdiv(n_pack, tile) < 2 and n_pack >= 2048:
        tile = _round_up(pl.cdiv(n_pack, 2), 128)
    grid = pl.cdiv(n_pack, tile)    # ragged last block masked by Pallas

    # ---- Params & BlockSpecs -----------------------------------------------
    in_specs = [
        pl.BlockSpec((tile, pack * c_in), lambda i: (i, 0)),   # x_i row tile
        pl.BlockSpec((tile, pack * c_in), lambda i: (i, 0)),   # x_j row tile
    ]
    flat_params = []
    # Constant block indices keep the (tiny) weights/biases VMEM-resident
    # across grid steps (no re-DMA between consecutive iterations).
    for layer in range(num_layers - 1):
        wt = jnp.asarray(weights[layer], param_dtype).T        # [d_in, d_out]
        w_p = _block_diag(wt, pack)                            # [P*d_in, P*d_out]
        b_p = jnp.tile(jnp.asarray(biases[layer], jnp.float32), pack)[None, :]
        flat_params += [w_p, b_p]
        in_specs += [pl.BlockSpec(w_p.shape, lambda i: (0, 0)),
                     pl.BlockSpec(b_p.shape, lambda i: (0, 0))]
    w_last_p = _block_diag(jnp.asarray(weights[-1], param_dtype), pack)
    b_last_p = jnp.tile(jnp.asarray(biases[-1], jnp.float32), pack)[:, None]
    flat_params += [w_last_p, b_last_p]
    in_specs += [pl.BlockSpec(w_last_p.shape, lambda i: (0, 0)),
                 pl.BlockSpec(b_last_p.shape, lambda i: (0, 0))]

    # Lane-dense transposed output: [P*c_out, n_pack] tiled as [P*c_out, tile].
    out_spec = pl.BlockSpec((pack * c_out, tile), lambda i: (0, i))

    # Advisory cost estimate so XLA schedules the call against surrounding ops
    # (e.g. the gathers that build x_i / x_j).
    flops = N * c_in + sum(2 * N * widths[l] * widths[l + 1]
                           for l in range(num_layers))
    bytes_accessed = (
        2 * N * c_in * x_i.dtype.itemsize
        + N * c_out * jnp.dtype(out_dtype).itemsize
        + sum(int(p.size) * p.dtype.itemsize for p in flat_params))
    cost = pl.CostEstimate(flops=flops, transcendentals=0,
                           bytes_accessed=bytes_accessed)

    kernel = functools.partial(_link_predictor_kernel, num_layers)

    out_t = pl.pallas_call(
        kernel,
        out_shape=jax.ShapeDtypeStruct((pack * c_out, n_pack), out_dtype),
        grid_spec=pltpu.PrefetchScalarGridSpec(
            num_scalar_prefetch=0,
            grid=(grid,),
            in_specs=in_specs,
            out_specs=out_spec,
        ),
        compiler_params=pltpu.CompilerParams(
            # Independent row tiles -> shard the grid across both TCs on v7x;
            # harmless on single-TC v5e/v6e.
            dimension_semantics=("parallel",),
            # Explicit scoped-VMEM limit (<= v7x's 64 MiB physical) instead of
            # relying on the 32 MiB default, so large tiles always fit.
            vmem_limit_bytes=64 * 1024 * 1024,
        ),
        cost_estimate=cost,
    )(xi_p, xj_p, *flat_params)

    # [P*c_out, n_pack] -> [N, c_out]: out_t[k*c_out + o, p] is row p*pack + k.
    out = jnp.transpose(out_t.reshape(pack, c_out, n_pack), (2, 0, 1))
    return out.reshape(N, c_out)


def init_linear_params(key, fan_in, fan_out, dtype=jnp.float32):
    """Matches torch.nn.Linear.reset_parameters:
    W [out, in], b [out] ~ U(-1/sqrt(fan_in), 1/sqrt(fan_in))."""
    kw, kb = jax.random.split(key)
    bound = 1.0 / (fan_in ** 0.5)
    w = jax.random.uniform(kw, (fan_out, fan_in), dtype, minval=-bound, maxval=bound)
    b = jax.random.uniform(kb, (fan_out,), dtype, minval=-bound, maxval=bound)
    return w, b


def reference_forward(x_i, x_j, weights, biases):
    x = x_i.astype(jnp.float32) * x_j.astype(jnp.float32)
    for w, b in zip(weights[:-1], biases[:-1]):
        x = jnp.maximum(x @ w.T.astype(jnp.float32) + b.astype(jnp.float32), 0.0)
    return x @ weights[-1].T.astype(jnp.float32) + biases[-1].astype(jnp.float32)


def _make_params(key, dims):
    weights, biases = [], []
    keys = jax.random.split(key, len(dims) - 1)
    for layer in range(len(dims) - 1):
        w, b = init_linear_params(keys[layer], dims[layer], dims[layer + 1])
        weights.append(w)
        biases.append(b)
    return weights, biases


if __name__ == "__main__":
    # Shapes consistent with the module: in=32, hidden=32, out=1, num_layers=3.
    in_channels, hidden_channels, out_channels, num_layers = 32, 32, 1, 3
    dims = [in_channels] + [hidden_channels] * (num_layers - 1) + [out_channels]

    key = jax.random.PRNGKey(0)
    k_params, k_xi, k_xj = jax.random.split(key, 3)
    weights, biases = _make_params(k_params, dims)

    # --- Case A: f32, packed lane layout, multi-step grid + ragged tile -----
    N = 1000
    x_i = jax.random.normal(k_xi, (N, in_channels), jnp.float32)
    x_j = jax.random.normal(k_xj, (N, in_channels), jnp.float32)
    out = jax.block_until_ready(
        link_predictor_forward(x_i, x_j, weights, biases, tile_rows=512))
    ref = reference_forward(x_i, x_j, weights, biases)
    assert out.shape == (N, out_channels), out.shape
    err = float(jnp.max(jnp.abs(out - ref)))
    assert jnp.allclose(out, ref, atol=1e-4, rtol=1e-4), f"f32 mismatch, max_err={err}"

    # --- Case B: bf16 datapath (recommended), single ragged packed tile -----
    N = 300
    x_i16 = jax.random.normal(k_xi, (N, in_channels), jnp.float32).astype(jnp.bfloat16)
    x_j16 = jax.random.normal(k_xj, (N, in_channels), jnp.float32).astype(jnp.bfloat16)
    w16 = [w.astype(jnp.bfloat16) for w in weights]   # shared quantization with ref
    out = jax.block_until_ready(link_predictor_forward(x_i16, x_j16, w16, biases))
    ref = reference_forward(x_i16, x_j16, w16, biases)
    assert out.shape == (N, out_channels), out.shape
    err = float(jnp.max(jnp.abs(out - ref)))
    assert jnp.allclose(out, ref, atol=3e-2, rtol=3e-2), f"bf16 mismatch, max_err={err}"

    # --- Case C: N not a multiple of the pack factor -> unpacked fallback ---
    N = 301
    x_i = jax.random.normal(k_xi, (N, in_channels), jnp.float32)
    x_j = jax.random.normal(k_xj, (N, in_channels), jnp.float32)
    out = jax.block_until_ready(link_predictor_forward(x_i, x_j, weights, biases))
    ref = reference_forward(x_i, x_j, weights, biases)
    assert out.shape == (N, out_channels), out.shape
    err = float(jnp.max(jnp.abs(out - ref)))
    assert jnp.allclose(out, ref, atol=1e-4, rtol=1e-4), f"fallback mismatch, max_err={err}"

    print("KERNEL_OK")
</pallas_src>

<mosaic_0001>
module attributes {stable_mosaic.version = 11 : i64} {
  func.func @_link_predictor_kernel(%arg0: i32, %arg1: memref<128x128xf32, #tpu.memory_space<vmem>>, %arg2: memref<128x128xf32, #tpu.memory_space<vmem>>, %arg3: memref<128x128xf32, #tpu.memory_space<vmem>>, %arg4: memref<1x128xf32, #tpu.memory_space<vmem>>, %arg5: memref<128x128xf32, #tpu.memory_space<vmem>>, %arg6: memref<1x128xf32, #tpu.memory_space<vmem>>, %arg7: memref<4x128xf32, #tpu.memory_space<vmem>>, %arg8: memref<4x1xf32, #tpu.memory_space<vmem>>, %arg9: memref<4x128xf32, #tpu.memory_space<vmem>>) attributes {dimension_semantics = [#tpu.dimension_semantics<parallel>], iteration_bounds = array<i64: 2>, scalar_prefetch = 0 : i64, scratch_operands = 0 : i64, tpu.core_type = #tpu.core_type<tc>, window_params = [{transform_indices = @transform_0, window_bounds = array<i64: 128, 128>}, {transform_indices = @transform_1, window_bounds = array<i64: 128, 128>}, {pipeline_mode = #tpu.pipeline_mode<synchronous>, transform_indices = @transform_2, window_bounds = array<i64: 128, 128>}, {pipeline_mode = #tpu.pipeline_mode<synchronous>, transform_indices = @transform_3, window_bounds = array<i64: 1, 128>}, {pipeline_mode = #tpu.pipeline_mode<synchronous>, transform_indices = @transform_4, window_bounds = array<i64: 128, 128>}, {pipeline_mode = #tpu.pipeline_mode<synchronous>, transform_indices = @transform_5, window_bounds = array<i64: 1, 128>}, {pipeline_mode = #tpu.pipeline_mode<synchronous>, transform_indices = @transform_6, window_bounds = array<i64: 4, 128>}, {pipeline_mode = #tpu.pipeline_mode<synchronous>, transform_indices = @transform_7, window_bounds = array<i64: 4, 1>}, {transform_indices = @transform_8, window_bounds = array<i64: 4, 128>}]} {
    %c0 = arith.constant 0 : index
    %c0_0 = arith.constant 0 : index
    %0 = vector.load %arg1[%c0, %c0_0] : memref<128x128xf32, #tpu.memory_space<vmem>>, vector<128x128xf32>
    %c0_1 = arith.constant 0 : index
    %c0_2 = arith.constant 0 : index
    %1 = vector.load %arg2[%c0_1, %c0_2] : memref<128x128xf32, #tpu.memory_space<vmem>>, vector<128x128xf32>
    %2 = arith.mulf %0, %1 : vector<128x128xf32>
    %c0_3 = arith.constant 0 : index
    %c0_4 = arith.constant 0 : index
    %3 = vector.load %arg3[%c0_3, %c0_4] : memref<128x128xf32, #tpu.memory_space<vmem>>, vector<128x128xf32>
    %c0_5 = arith.constant 0 : index
    %c0_6 = arith.constant 0 : index
    %4 = vector.load %arg4[%c0_5, %c0_6] : memref<1x128xf32, #tpu.memory_space<vmem>>, vector<1x128xf32>
    %cst = arith.constant dense<0.000000e+00> : vector<128x128xf32>
    %5 = tpu.matmul %2, %3, %cst {dimension_numbers = #tpu.dot_dimension_numbers<[1], [0], [0], [1], [0, 0, 1, 1], [], []>} : vector<128x128xf32>, vector<128x128xf32>, vector<128x128xf32> -> vector<128x128xf32>
    %6 = vector.broadcast %4 : vector<1x128xf32> to vector<128x128xf32>
    %7 = arith.addf %5, %6 : vector<128x128xf32>
    %cst_7 = arith.constant 0.000000e+00 : f32
    %8 = vector.broadcast %cst_7 : f32 to vector<128x128xf32>
    %9 = arith.maximumf %7, %8 : vector<128x128xf32>
    %c0_8 = arith.constant 0 : index
    %c0_9 = arith.constant 0 : index
    %10 = vector.load %arg5[%c0_8, %c0_9] : memref<128x128xf32, #tpu.memory_space<vmem>>, vector<128x128xf32>
    %c0_10 = arith.constant 0 : index
    %c0_11 = arith.constant 0 : index
    %11 = vector.load %arg6[%c0_10, %c0_11] : memref<1x128xf32, #tpu.memory_space<vmem>>, vector<1x128xf32>
    %cst_12 = arith.constant dense<0.000000e+00> : vector<128x128xf32>
    %12 = tpu.matmul %9, %10, %cst_12 {dimension_numbers = #tpu.dot_dimension_numbers<[1], [0], [0], [1], [0, 0, 1, 1], [], []>} : vector<128x128xf32>, vector<128x128xf32>, vector<128x128xf32> -> vector<128x128xf32>
    %13 = vector.broadcast %11 : vector<1x128xf32> to vector<128x128xf32>
    %14 = arith.addf %12, %13 : vector<128x128xf32>
    %cst_13 = arith.constant 0.000000e+00 : f32
    %15 = vector.broadcast %cst_13 : f32 to vector<128x128xf32>
    %16 = arith.maximumf %14, %15 : vector<128x128xf32>
    %c0_14 = arith.constant 0 : index
    %c0_15 = arith.constant 0 : index
    %17 = vector.load %arg7[%c0_14, %c0_15] : memref<4x128xf32, #tpu.memory_space<vmem>>, vector<4x128xf32>
    %c0_16 = arith.constant 0 : index
    %c0_17 = arith.constant 0 : index
    %18 = vector.load %arg8[%c0_16, %c0_17] : memref<4x1xf32, #tpu.memory_space<vmem>>, vector<4x1xf32>
    %cst_18 = arith.constant dense<0.000000e+00> : vector<4x128xf32>
    %19 = tpu.matmul %17, %16, %cst_18 {dimension_numbers = #tpu.dot_dimension_numbers<[1], [1], [0], [0], [0, 0, 1, 0], [], []>} : vector<4x128xf32>, vector<128x128xf32>, vector<4x128xf32> -> vector<4x128xf32>
    %20 = vector.broadcast %18 : vector<4x1xf32> to vector<4x128xf32>
    %21 = arith.addf %19, %20 : vector<4x128xf32>
    %c0_19 = arith.constant 0 : index
    %c0_20 = arith.constant 0 : index
    %22 = vector.load %arg9[%c0_19, %c0_20] : memref<4x128xf32, #tpu.memory_space<vmem>>, vector<4x128xf32>
    tpu.vector_store %arg9[%c0_19, %c0_20], %21 {strides = array<i32>} : memref<4x128xf32, #tpu.memory_space<vmem>>, vector<4x128xf32>,
    return
  }
  func.func @transform_0(%arg0: i32) -> (i32, i32) {
    %c0_i32 = arith.constant 0 : i32
    %c0_i32_0 = arith.constant 0 : i32
    return %arg0, %c0_i32 : i32, i32
  }
  func.func @transform_1(%arg0: i32) -> (i32, i32) {
    %c0_i32 = arith.constant 0 : i32
    %c0_i32_0 = arith.constant 0 : i32
    return %arg0, %c0_i32 : i32, i32
  }
  func.func @transform_2(%arg0: i32) -> (i32, i32) {
    %c0_i32 = arith.constant 0 : i32
    %c0_i32_0 = arith.constant 0 : i32
    %c0_i32_1 = arith.constant 0 : i32
    return %c0_i32, %c0_i32_0 : i32, i32
  }
  func.func @transform_3(%arg0: i32) -> (i32, i32) {
    %c0_i32 = arith.constant 0 : i32
    %c0_i32_0 = arith.constant 0 : i32
    %c0_i32_1 = arith.constant 0 : i32
    return %c0_i32, %c0_i32_0 : i32, i32
  }
  func.func @transform_4(%arg0: i32) -> (i32, i32) {
    %c0_i32 = arith.constant 0 : i32
    %c0_i32_0 = arith.constant 0 : i32
    %c0_i32_1 = arith.constant 0 : i32
    return %c0_i32, %c0_i32_0 : i32, i32
  }
  func.func @transform_5(%arg0: i32) -> (i32, i32) {
    %c0_i32 = arith.constant 0 : i32
    %c0_i32_0 = arith.constant 0 : i32
    %c0_i32_1 = arith.constant 0 : i32
    return %c0_i32, %c0_i32_0 : i32, i32
  }
  func.func @transform_6(%arg0: i32) -> (i32, i32) {
    %c0_i32 = arith.constant 0 : i32
    %c0_i32_0 = arith.constant 0 : i32
    %c0_i32_1 = arith.constant 0 : i32
    return %c0_i32, %c0_i32_0 : i32, i32
  }
  func.func @transform_7(%arg0: i32) -> (i32, i32) {
    %c0_i32 = arith.constant 0 : i32
    %c0_i32_0 = arith.constant 0 : i32
    %c0_i32_1 = arith.constant 0 : i32
    return %c0_i32, %c0_i32_0 : i32, i32
  }
  func.func @transform_8(%arg0: i32) -> (i32, i32) {
    %c0_i32 = arith.constant 0 : i32
    %c0_i32_0 = arith.constant 0 : i32
    return %c0_i32, %arg0 : i32, i32
  }
}

</mosaic_0001>

<llo_original>
// kernel: tpu_custom_call.1
$region0: #{tpu_custom_call.1}
  #allocation0 [shape = 'u32[]', space=smem, size = 0x4, offset = 0x4, fixed_abs, tag = 'smem constant byte address 0x4 - core index']
  #allocation1 [shape = 'u32[72,128]{1,0:T(1,128)}', space=vmem, size = 0x9000, scoped, tag = 'internal scratch']
  %s0 = inlined_call_operand.hbm [shape: f32[250,128], index: 0, kind: input, shape index: {}]
  %s1 = inlined_call_operand.hbm [shape: f32[250,128], index: 1, kind: input, shape index: {}]
  %s2 = inlined_call_operand.hbm [shape: f32[128,128], index: 2, kind: input, shape index: {}]
  %s3 = inlined_call_operand.vmem [shape: f32[1,128], index: 3, kind: input, shape index: {}]
  %s4 = inlined_call_operand.hbm [shape: f32[128,128], index: 4, kind: input, shape index: {}]
  %s5 = inlined_call_operand.vmem [shape: f32[1,128], index: 5, kind: input, shape index: {}]
  %s6 = inlined_call_operand.vmem [shape: f32[4,128], index: 6, kind: input, shape index: {}]
  %s7 = inlined_call_operand.vmem [shape: f32[4,1], index: 7, kind: input, shape index: {}]
  %s8 = inlined_call_operand.hbm [shape: f32[4,250], index: 8, kind: output, shape index: {}]
  %s9 = sld [smem:[#allocation0]]
  $region81: #{tpu_custom_call.1} parent=0
    _
  %s11 = ssub.s32 1, %s9
  %s12 = scalar_select 0, %s11, %s9
  $region1: #{tpu_custom_call.1} parent=0
    #allocation2 [shape = 'u8[131072]{0}', space=vmem, size = 0x20000, scoped, tag = 'input window, operand 0']
    #allocation3 [shape = 's32[2]{0}', space=sflag, size = 0x8, scoped, tag = 'scoped memory for tpu_custom_call.1']
    #allocation4 [shape = 's32[2]{0}', space=sflag, size = 0x8, scoped, tag = 'scoped memory for tpu_custom_call.1']
    #allocation5 [shape = 'u8[131072]{0}', space=vmem, size = 0x20000, scoped, tag = 'input window, operand 1']
    #allocation6 [shape = 's32[2]{0}', space=sflag, size = 0x8, scoped, tag = 'scoped memory for tpu_custom_call.1']
    #allocation7 [shape = 'u8[65536]{0}', space=vmem, size = 0x10000, scoped, tag = 'input window, operand 2, single buffered']
    #allocation8 [shape = 'u8[65536]{0}', space=vmem, size = 0x10000, scoped, tag = 'input window, operand 4, single buffered']
    #allocation9 [shape = 's32[1]{0}', space=sflag, size = 0x4, scoped, tag = 'scoped memory for tpu_custom_call.1']
    #allocation10 [shape = 'u8[4096]{0}', space=vmem, size = 0x1000, scoped, tag = 'output window, operand 0']
    %13 = vsyncpa [#allocation3], 0
    %s14 = scalar_lea.sflag [#allocation3], 1
    %15 = vsyncpa %s14, 0
    %16 = vsyncpa [#allocation6], 0
    %s17 = scalar_lea.sflag [#allocation6], 1
    %18 = vsyncpa %s17, 0
    %19 = vsyncpa [#allocation9], 0
    %20 = vsyncpa [#allocation4], 0
    %s21 = scalar_lea.sflag [#allocation4], 1
    %22 = vsyncpa %s21, 0
    loop: start=0, step=1, limit=4
    $region2: #{tpu_custom_call.1} parent=1 // loop_pre_header
      _
    $region3: #{tpu_custom_call.1} parent=1 // loop_header
      %s24 = sphi 0, %s28
      %p25 = scmp.ge.s32.totalorder %s24, 4
      %s34 = sphi 0, %s36
      %s37 = sphi 0, %s34
      %s38 = sphi 0, %s37
      %s54 = sphi 0, %s38
      %s60 = sphi 0, %s62
      %s63 = sphi 0, %s60
      %s64 = sphi 0, %s63
      %s80 = sphi 0, %s64
      %s84 = sphi 0, %s84
      %s86 = sphi 0, %s84
      %s87 = sphi 0, %s86
      %s101 = sphi 0, %s87
      %s105 = sphi 0, %s105
      %s107 = sphi 0, %s105
      %s108 = sphi 0, %s107
      %s122 = sphi 0, %s108
      %s126 = sphi 0, %s126
      %s128 = sphi 0, %s126
      %s129 = sphi 0, %s128
      %s143 = sphi 0, %s129
      %s147 = sphi 0, %s147
      %s149 = sphi 0, %s147
      %s150 = sphi 0, %s149
      %s164 = sphi 0, %s150
      %s168 = sphi 0, %s168
      %s170 = sphi 0, %s168
      %s171 = sphi 0, %s170
      %s185 = sphi 0, %s171
      %s189 = sphi 0, %s189
      %s191 = sphi 0, %s189
      %s192 = sphi 0, %s191
      %s206 = sphi 0, %s192
      %s212 = sphi 0, %s214
      %s215 = sphi 0, %s212
      %s216 = sphi 0, %s215
      %s232 = sphi 0, %s216
    $region4: #{tpu_custom_call.1} parent=1 // loop_header_branch
      %27 = sbr.rel (%p25) target = $region8
    $region5: #{tpu_custom_call.1} parent=1 // loop_body
      %s29 = ssub.s32 %s24, 1
      %s30 = ssub.s32 %s24, 2
      %s31 = sadd.s32 %s24, 1
      %s32 = ssub.s32 %s24, %s31
      %p33 = scmp.eq.s32.totalorder %s32, 0
      %s35 = sadd.s32 %s34, 1
      %s36 = scalar_select %p33, %s34, %s35
      %p39 = pneg %p33
      %p40 = scmp.eq.s32.totalorder %s24, 1
      %p41 = por %p39, %p40
      %p42 = scmp.ne.s32.totalorder %s34, %s37
      %p43 = scmp.eq.s32.totalorder %s24, 0
      %p44 = por %p42, %p43
      %p45 = scmp.ne.s32.totalorder %s34, %s37
      %p46 = scmp.eq.s32.totalorder %s29, 1
      %p47 = por %p45, %p46
      %p48 = scmp.ne.s32.totalorder %s37, %s38
      %p49 = scmp.eq.s32.totalorder %s29, 0
      %p50 = por %p48, %p49
      %p51 = scmp.ne.s32.totalorder %s37, %s38
      %p52 = scmp.eq.s32.totalorder %s30, 1
      %p53 = por %p51, %p52
      %p55 = scmp.ne.s32.totalorder %s38, %s54
      %p56 = scmp.eq.s32.totalorder %s30, 0
      %p57 = por %p55, %p56
      %s58 = ssub.s32 %s24, %s31
      %p59 = scmp.eq.s32.totalorder %s58, 0
      %s61 = sadd.s32 %s60, 1
      %s62 = scalar_select %p59, %s60, %s61
      %p65 = pneg %p59
      %p66 = scmp.eq.s32.totalorder %s24, 1
      %p67 = por %p65, %p66
      %p68 = scmp.ne.s32.totalorder %s60, %s63
      %p69 = scmp.eq.s32.totalorder %s24, 0
      %p70 = por %p68, %p69
      %p71 = scmp.ne.s32.totalorder %s60, %s63
      %p72 = scmp.eq.s32.totalorder %s29, 1
      %p73 = por %p71, %p72
      %p74 = scmp.ne.s32.totalorder %s63, %s64
      %p75 = scmp.eq.s32.totalorder %s29, 0
      %p76 = por %p74, %p75
      %p77 = scmp.ne.s32.totalorder %s63, %s64
      %p78 = scmp.eq.s32.totalorder %s30, 1
      %p79 = por %p77, %p78
      %p81 = scmp.ne.s32.totalorder %s64, %s80
      %p82 = scmp.eq.s32.totalorder %s30, 0
      %p83 = por %p81, %p82
      %s85 = sadd.s32 %s84, 1
      %p88 = scmp.eq.s32.totalorder %s24, 1
      %p89 = scmp.ne.s32.totalorder %s84, %s86
      %p90 = scmp.eq.s32.totalorder %s24, 0
      %p91 = por %p89, %p90
      %p92 = scmp.ne.s32.totalorder %s84, %s86
      %p93 = scmp.eq.s32.totalorder %s29, 1
      %p94 = por %p92, %p93
      %p95 = scmp.ne.s32.totalorder %s86, %s87
      %p96 = scmp.eq.s32.totalorder %s29, 0
      %p97 = por %p95, %p96
      %p98 = scmp.ne.s32.totalorder %s86, %s87
      %p99 = scmp.eq.s32.totalorder %s30, 1
      %p100 = por %p98, %p99
      %p102 = scmp.ne.s32.totalorder %s87, %s101
      %p103 = scmp.eq.s32.totalorder %s30, 0
      %p104 = por %p102, %p103
      %s106 = sadd.s32 %s105, 1
      %p109 = scmp.eq.s32.totalorder %s24, 1
      %p110 = scmp.ne.s32.totalorder %s105, %s107
      %p111 = scmp.eq.s32.totalorder %s24, 0
      %p112 = por %p110, %p111
      %p113 = scmp.ne.s32.totalorder %s105, %s107
      %p114 = scmp.eq.s32.totalorder %s29, 1
      %p115 = por %p113, %p114
      %p116 = scmp.ne.s32.totalorder %s107, %s108
      %p117 = scmp.eq.s32.totalorder %s29, 0
      %p118 = por %p116, %p117
      %p119 = scmp.ne.s32.totalorder %s107, %s108
      %p120 = scmp.eq.s32.totalorder %s30, 1
      %p121 = por %p119, %p120
      %p123 = scmp.ne.s32.totalorder %s108, %s122
      %p124 = scmp.eq.s32.totalorder %s30, 0
      %p125 = por %p123, %p124
      %s127 = sadd.s32 %s126, 1
      %p130 = scmp.eq.s32.totalorder %s24, 1
      %p131 = scmp.ne.s32.totalorder %s126, %s128
      %p132 = scmp.eq.s32.totalorder %s24, 0
      %p133 = por %p131, %p132
      %p134 = scmp.ne.s32.totalorder %s126, %s128
      %p135 = scmp.eq.s32.totalorder %s29, 1
      %p136 = por %p134, %p135
      %p137 = scmp.ne.s32.totalorder %s128, %s129
      %p138 = scmp.eq.s32.totalorder %s29, 0
      %p139 = por %p137, %p138
      %p140 = scmp.ne.s32.totalorder %s128, %s129
      %p141 = scmp.eq.s32.totalorder %s30, 1
      %p142 = por %p140, %p141
      %p144 = scmp.ne.s32.totalorder %s129, %s143
      %p145 = scmp.eq.s32.totalorder %s30, 0
      %p146 = por %p144, %p145
      %s148 = sadd.s32 %s147, 1
      %p151 = scmp.eq.s32.totalorder %s24, 1
      %p152 = scmp.ne.s32.totalorder %s147, %s149
      %p153 = scmp.eq.s32.totalorder %s24, 0
      %p154 = por %p152, %p153
      %p155 = scmp.ne.s32.totalorder %s147, %s149
      %p156 = scmp.eq.s32.totalorder %s29, 1
      %p157 = por %p155, %p156
      %p158 = scmp.ne.s32.totalorder %s149, %s150
      %p159 = scmp.eq.s32.totalorder %s29, 0
      %p160 = por %p158, %p159
      %p161 = scmp.ne.s32.totalorder %s149, %s150
      %p162 = scmp.eq.s32.totalorder %s30, 1
      %p163 = por %p161, %p162
      %p165 = scmp.ne.s32.totalorder %s150, %s164
      %p166 = scmp.eq.s32.totalorder %s30, 0
      %p167 = por %p165, %p166
      %s169 = sadd.s32 %s168, 1
      %p172 = scmp.eq.s32.totalorder %s24, 1
      %p173 = scmp.ne.s32.totalorder %s168, %s170
      %p174 = scmp.eq.s32.totalorder %s24, 0
      %p175 = por %p173, %p174
      %p176 = scmp.ne.s32.totalorder %s168, %s170
      %p177 = scmp.eq.s32.totalorder %s29, 1
      %p178 = por %p176, %p177
      %p179 = scmp.ne.s32.totalorder %s170, %s171
      %p180 = scmp.eq.s32.totalorder %s29, 0
      %p181 = por %p179, %p180
      %p182 = scmp.ne.s32.totalorder %s170, %s171
      %p183 = scmp.eq.s32.totalorder %s30, 1
      %p184 = por %p182, %p183
      %p186 = scmp.ne.s32.totalorder %s171, %s185
      %p187 = scmp.eq.s32.totalorder %s30, 0
      %p188 = por %p186, %p187
      %s190 = sadd.s32 %s189, 1
      %p193 = scmp.eq.s32.totalorder %s24, 1
      %p194 = scmp.ne.s32.totalorder %s189, %s191
      %p195 = scmp.eq.s32.totalorder %s24, 0
      %p196 = por %p194, %p195
      %p197 = scmp.ne.s32.totalorder %s189, %s191
      %p198 = scmp.eq.s32.totalorder %s29, 1
      %p199 = por %p197, %p198
      %p200 = scmp.ne.s32.totalorder %s191, %s192
      %p201 = scmp.eq.s32.totalorder %s29, 0
      %p202 = por %p200, %p201
      %p203 = scmp.ne.s32.totalorder %s191, %s192
      %p204 = scmp.eq.s32.totalorder %s30, 1
      %p205 = por %p203, %p204
      %p207 = scmp.ne.s32.totalorder %s192, %s206
      %p208 = scmp.eq.s32.totalorder %s30, 0
      %p209 = por %p207, %p208
      %s210 = ssub.s32 %s24, %s31
      %p211 = scmp.eq.s32.totalorder %s210, 0
      %s213 = sadd.s32 %s212, 1
      %s214 = scalar_select %p211, %s212, %s213
      %p217 = pneg %p211
      %p218 = scmp.eq.s32.totalorder %s24, 1
      %p219 = por %p217, %p218
      %p220 = scmp.ne.s32.totalorder %s212, %s215
      %p221 = scmp.eq.s32.totalorder %s24, 0
      %p222 = por %p220, %p221
      %p223 = scmp.ne.s32.totalorder %s212, %s215
      %p224 = scmp.eq.s32.totalorder %s29, 1
      %p225 = por %p223, %p224
      %p226 = scmp.ne.s32.totalorder %s215, %s216
      %p227 = scmp.eq.s32.totalorder %s29, 0
      %p228 = por %p226, %p227
      %p229 = scmp.ne.s32.totalorder %s215, %s216
      %p230 = scmp.eq.s32.totalorder %s30, 1
      %p231 = por %p229, %p230
      %p233 = scmp.ne.s32.totalorder %s216, %s232
      %p234 = scmp.eq.s32.totalorder %s30, 0
      %p235 = por %p233, %p234
      %p236 = scmp.le.s32.totalorder 1, %s24
      %p237 = scmp.lt.s32.totalorder %s24, 3
      %p238 = pnand %p236, %p237
      %p239 = pneg %p238
      // Predicated region
      $region9: #{tpu_custom_call.1} parent=5 // pred_check
        _
      $region10: #{tpu_custom_call.1} parent=5 // pred_check_branch
        %241 = sbr.rel (%p238) target = $region12
      $region11: #{tpu_custom_call.1} parent=5 // pred_region
        %s242 = ssub.s32 %s24, 1
        // Predicated region
        $region13: #{tpu_custom_call.1} parent=11 // pred_check
          %p243 = pneg %p97
        $region14: #{tpu_custom_call.1} parent=11 // pred_check_branch
          %245 = sbr.rel (%p243) target = $region16
        $region15: #{tpu_custom_call.1} parent=11 // pred_region
          %247 = vsyncadd [#allocation6], 0
          %s248 = sshll.u32 %s2, 4
          %s249 = int_to_ptr.hbm [resolvable:$true] %s248
          %s250 = sshll.u32 [#allocation7], 4
          %s251 = int_to_ptr.vmem [resolvable:$true] %s250
          %256 = dma.hbm_to_vmem [thread:$0]  %s249, 2048, %s251, [#allocation6], 128, 128, 8
        $region16: #{tpu_custom_call.1} parent=11 // pred_fallthru
          _
        // Predicated region
        $region17: #{tpu_custom_call.1} parent=11 // pred_check
          %p257 = pneg %p118
        $region18: #{tpu_custom_call.1} parent=11 // pred_check_branch
          %259 = sbr.rel (%p257) target = $region20
        $region19: #{tpu_custom_call.1} parent=11 // pred_region
          _
        $region20: #{tpu_custom_call.1} parent=11 // pred_fallthru
          _
        // Predicated region
        $region21: #{tpu_custom_call.1} parent=11 // pred_check
          %p260 = pneg %p139
        $region22: #{tpu_custom_call.1} parent=11 // pred_check_branch
          %262 = sbr.rel (%p260) target = $region24
        $region23: #{tpu_custom_call.1} parent=11 // pred_region
          %264 = vsyncadd [#allocation9], 0
          %s265 = sshll.u32 %s4, 4
          %s266 = int_to_ptr.hbm [resolvable:$true] %s265
          %s267 = sshll.u32 [#allocation8], 4
          %s268 = int_to_ptr.vmem [resolvable:$true] %s267
          %273 = dma.hbm_to_vmem [thread:$0]  %s266, 2048, %s268, [#allocation9], 128, 128, 8
        $region24: #{tpu_custom_call.1} parent=11 // pred_fallthru
          _
        // Predicated region
        $region25: #{tpu_custom_call.1} parent=11 // pred_check
          %p274 = pneg %p160
        $region26: #{tpu_custom_call.1} parent=11 // pred_check_branch
          %276 = sbr.rel (%p274) target = $region28
        $region27: #{tpu_custom_call.1} parent=11 // pred_region
          _
        $region28: #{tpu_custom_call.1} parent=11 // pred_fallthru
          _
        // Predicated region
        $region29: #{tpu_custom_call.1} parent=11 // pred_check
          %p277 = pneg %p181
        $region30: #{tpu_custom_call.1} parent=11 // pred_check_branch
          %279 = sbr.rel (%p277) target = $region32
        $region31: #{tpu_custom_call.1} parent=11 // pred_region
          _
        $region32: #{tpu_custom_call.1} parent=11 // pred_fallthru
          _
        // Predicated region
        $region33: #{tpu_custom_call.1} parent=11 // pred_check
          %p280 = pneg %p202
        $region34: #{tpu_custom_call.1} parent=11 // pred_check_branch
          %282 = sbr.rel (%p280) target = $region36
        $region35: #{tpu_custom_call.1} parent=11 // pred_region
          _
        $region36: #{tpu_custom_call.1} parent=11 // pred_fallthru
          _
      $region12: #{tpu_custom_call.1} parent=5 // pred_fallthru
        _
      %p283 = scmp.lt.s32.totalorder %s24, 2
      // Predicated region
      $region37: #{tpu_custom_call.1} parent=5 // pred_check
        %p284 = pneg %p283
      $region38: #{tpu_custom_call.1} parent=5 // pred_check_branch
        %286 = sbr.rel (%p284) target = $region40
      $region39: #{tpu_custom_call.1} parent=5 // pred_region
        // Predicated region
        $region41: #{tpu_custom_call.1} parent=39 // pred_check
          %p287 = pneg %p44
        $region42: #{tpu_custom_call.1} parent=39 // pred_check_branch
          %289 = sbr.rel (%p287) target = $region44
        $region43: #{tpu_custom_call.1} parent=39 // pred_region
          %s290 = sand.u32 %s34, 1
          %s291 = scalar_lea.sflag [#allocation3], %s290
          %s292 = sand.u32 %s34, 1
          %s293 = smul.addr %s292, 128
          %s294 = scalar_lea.vmem [#allocation2], %s293
          %s295 = smul.u32 16, %s24
          %297 = vsyncadd %s291, 0
          %s298 = smul.addr %s295, 8
          %s299 = scalar_lea.hbm %s0, %s298
          %s300 = sshll.u32 %s299, 4
          %s301 = int_to_ptr.hbm [resolvable:$true] %s300
          %s302 = sshll.u32 %s294, 4
          %s303 = int_to_ptr.vmem [resolvable:$true] %s302
          %308 = dma.hbm_to_vmem [thread:$0]  %s301, 2048, %s303, %s291, 128, 128, 8
        $region44: #{tpu_custom_call.1} parent=39 // pred_fallthru
          _
        // Predicated region
        $region45: #{tpu_custom_call.1} parent=39 // pred_check
          %p309 = pneg %p70
        $region46: #{tpu_custom_call.1} parent=39 // pred_check_branch
          %311 = sbr.rel (%p309) target = $region48
        $region47: #{tpu_custom_call.1} parent=39 // pred_region
          %s312 = sand.u32 %s24, 1
          %s313 = scalar_lea.sflag [#allocation6], %s312
          %s314 = sand.u32 %s60, 1
          %s315 = smul.addr %s314, 128
          %s316 = scalar_lea.vmem [#allocation5], %s315
          %s317 = smul.u32 16, %s24
          %319 = vsyncadd %s313, 0
          %s320 = smul.addr %s317, 8
          %s321 = scalar_lea.hbm %s1, %s320
          %s322 = sshll.u32 %s321, 4
          %s323 = int_to_ptr.hbm [resolvable:$true] %s322
          %s324 = sshll.u32 %s316, 4
          %s325 = int_to_ptr.vmem [resolvable:$true] %s324
          %330 = dma.hbm_to_vmem [thread:$0]  %s323, 2048, %s325, %s313, 128, 128, 8
        $region48: #{tpu_custom_call.1} parent=39 // pred_fallthru
          _
      $region40: #{tpu_custom_call.1} parent=5 // pred_fallthru
        _
      %p331 = scmp.le.s32.totalorder 1, %s24
      %p332 = scmp.lt.s32.totalorder %s24, 3
      %p333 = pnand %p331, %p332
      %p334 = pneg %p333
      // Predicated region
      $region49: #{tpu_custom_call.1} parent=5 // pred_check
        _
      $region50: #{tpu_custom_call.1} parent=5 // pred_check_branch
        %336 = sbr.rel (%p333) target = $region52
      $region51: #{tpu_custom_call.1} parent=5 // pred_region
        %s337 = ssub.s32 %s24, 1
        %s338 = sand.u32 %s37, 1
        %s339 = scalar_lea.sflag [#allocation3], %s338
        %s340 = sand.u32 %s37, 1
        %s341 = smul.addr %s340, 128
        %s342 = scalar_lea.vmem [#allocation2], %s341
        // Predicated region
        $region53: #{tpu_custom_call.1} parent=51 // pred_check
          %p343 = pneg %p50
        $region54: #{tpu_custom_call.1} parent=51 // pred_check_branch
          %345 = sbr.rel (%p343) target = $region56
        $region55: #{tpu_custom_call.1} parent=51 // pred_region
          %347 = dma.done %s339, 2048
        $region56: #{tpu_custom_call.1} parent=51 // pred_fallthru
          _
        %s348 = sand.u32 %s29, 1
        %s349 = scalar_lea.sflag [#allocation6], %s348
        %s350 = sand.u32 %s63, 1
        %s351 = smul.addr %s350, 128
        %s352 = scalar_lea.vmem [#allocation5], %s351
        // Predicated region
        $region57: #{tpu_custom_call.1} parent=51 // pred_check
          %p353 = pneg %p76
        $region58: #{tpu_custom_call.1} parent=51 // pred_check_branch
          %355 = sbr.rel (%p353) target = $region60
        $region59: #{tpu_custom_call.1} parent=51 // pred_region
          %357 = dma.done %s349, 2048
        $region60: #{tpu_custom_call.1} parent=51 // pred_fallthru
          _
        // Predicated region
        $region61: #{tpu_custom_call.1} parent=51 // pred_check
          %p358 = pneg %p97
        $region62: #{tpu_custom_call.1} parent=51 // pred_check_branch
          %360 = sbr.rel (%p358) target = $region64
        $region63: #{tpu_custom_call.1} parent=51 // pred_region
          %362 = dma.done [#allocation6], 2048
        $region64: #{tpu_custom_call.1} parent=51 // pred_fallthru
          _
        // Predicated region
        $region65: #{tpu_custom_call.1} parent=51 // pred_check
          %p363 = pneg %p139
        $region66: #{tpu_custom_call.1} parent=51 // pred_check_branch
          %365 = sbr.rel (%p363) target = $region68
        $region67: #{tpu_custom_call.1} parent=51 // pred_region
          %367 = dma.done [#allocation9], 2048
        $region68: #{tpu_custom_call.1} parent=51 // pred_fallthru
          _
        %s368 = sand.u32 %s37, 1
        %s369 = scalar_lea.sflag [#allocation3], %s368
        %s370 = sand.u32 %s37, 1
        %s371 = smul.addr %s370, 128
        %s372 = scalar_lea.vmem [#allocation2], %s371
        %p373 = pneg %p50
        %p374 = pneg %p47
        %s375 = sand.u32 %s29, 1
        %s376 = scalar_lea.sflag [#allocation6], %s375
        %s377 = sand.u32 %s63, 1
        %s378 = smul.addr %s377, 128
        %s379 = scalar_lea.vmem [#allocation5], %s378
        %p380 = pneg %p76
        %p381 = pneg %p73
        %p382 = pneg %p97
        %p383 = pneg %p94
        %p384 = pneg %p118
        %p385 = pneg %p115
        %p386 = pneg %p139
        %p387 = pneg %p136
        %p388 = pneg %p160
        %p389 = pneg %p157
        %p390 = pneg %p181
        %p391 = pneg %p178
        %p392 = pneg %p202
        %p393 = pneg %p199
        %p394 = pneg %p228
        %p395 = pneg %p225
        %s396 = sand.u32 %s215, 1
        %s397 = scalar_lea.sflag [#allocation4], %s396
        %s398 = sand.u32 %s215, 1
        %s399 = smul.addr %s398, 4
        %s400 = scalar_lea.vmem [#allocation10], %s399
        %s401 = smul.u32 16, %s29
        %s402 = smul.u32 16, %s29
        %v403 = vld [vmem:[%s342] sm:$0xff]
        %v404 = vld [vmem:[%s342 + $0x8] sm:$0xff]
        %v405 = vld [vmem:[%s342 + $0x10] sm:$0xff]
        %v406 = vld [vmem:[%s342 + $0x18] sm:$0xff]
        %v407 = vld [vmem:[%s342 + $0x20] sm:$0xff]
        %v408 = vld [vmem:[%s342 + $0x28] sm:$0xff]
        %v409 = vld [vmem:[%s342 + $0x30] sm:$0xff]
        %v410 = vld [vmem:[%s342 + $0x38] sm:$0xff]
        %v411 = vld [vmem:[%s342 + $0x40] sm:$0xff]
        %v412 = vld [vmem:[%s342 + $0x48] sm:$0xff]
        %v413 = vld [vmem:[%s342 + $0x50] sm:$0xff]
        %v414 = vld [vmem:[%s342 + $0x58] sm:$0xff]
        %v415 = vld [vmem:[%s342 + $0x60] sm:$0xff]
        %v416 = vld [vmem:[%s342 + $0x68] sm:$0xff]
        %v417 = vld [vmem:[%s342 + $0x70] sm:$0xff]
        %v418 = vld [vmem:[%s342 + $0x78] sm:$0xff]
        %v419 = vld [vmem:[%s352] sm:$0xff]
        %v420 = vld [vmem:[%s352 + $0x8] sm:$0xff]
        %v421 = vld [vmem:[%s352 + $0x10] sm:$0xff]
        %v422 = vld [vmem:[%s352 + $0x18] sm:$0xff]
        %v423 = vld [vmem:[%s352 + $0x20] sm:$0xff]
        %v424 = vld [vmem:[%s352 + $0x28] sm:$0xff]
        %v425 = vld [vmem:[%s352 + $0x30] sm:$0xff]
        %v426 = vld [vmem:[%s352 + $0x38] sm:$0xff]
        %v427 = vld [vmem:[%s352 + $0x40] sm:$0xff]
        %v428 = vld [vmem:[%s352 + $0x48] sm:$0xff]
        %v429 = vld [vmem:[%s352 + $0x50] sm:$0xff]
        %v430 = vld [vmem:[%s352 + $0x58] sm:$0xff]
        %v431 = vld [vmem:[%s352 + $0x60] sm:$0xff]
        %v432 = vld [vmem:[%s352 + $0x68] sm:$0xff]
        %v433 = vld [vmem:[%s352 + $0x70] sm:$0xff]
        %v434 = vld [vmem:[%s352 + $0x78] sm:$0xff]
        %v435 = vmul.f32 %v403, %v419
        %v436 = vmul.f32 %v404, %v420
        %v437 = vmul.f32 %v405, %v421
        %v438 = vmul.f32 %v406, %v422
        %v439 = vmul.f32 %v407, %v423
        %v440 = vmul.f32 %v408, %v424
        %v441 = vmul.f32 %v409, %v425
        %v442 = vmul.f32 %v410, %v426
        %v443 = vmul.f32 %v411, %v427
        %v444 = vmul.f32 %v412, %v428
        %v445 = vmul.f32 %v413, %v429
        %v446 = vmul.f32 %v414, %v430
        %v447 = vmul.f32 %v415, %v431
        %v448 = vmul.f32 %v416, %v432
        %v449 = vmul.f32 %v417, %v433
        %v450 = vmul.f32 %v418, %v434
        %v451 = vld [vmem:[#allocation7] sm:$0xff]
        %v452 = vld [vmem:[#allocation7 + $0x8] sm:$0xff]
        %v453 = vld [vmem:[#allocation7 + $0x10] sm:$0xff]
        %v454 = vld [vmem:[#allocation7 + $0x18] sm:$0xff]
        %v455 = vld [vmem:[#allocation7 + $0x20] sm:$0xff]
        %v456 = vld [vmem:[#allocation7 + $0x28] sm:$0xff]
        %v457 = vld [vmem:[#allocation7 + $0x30] sm:$0xff]
        %v458 = vld [vmem:[#allocation7 + $0x38] sm:$0xff]
        %v459 = vld [vmem:[#allocation7 + $0x40] sm:$0xff]
        %v460 = vld [vmem:[#allocation7 + $0x48] sm:$0xff]
        %v461 = vld [vmem:[#allocation7 + $0x50] sm:$0xff]
        %v462 = vld [vmem:[#allocation7 + $0x58] sm:$0xff]
        %v463 = vld [vmem:[#allocation7 + $0x60] sm:$0xff]
        %v464 = vld [vmem:[#allocation7 + $0x68] sm:$0xff]
        %v465 = vld [vmem:[#allocation7 + $0x70] sm:$0xff]
        %v466 = vld [vmem:[#allocation7 + $0x78] sm:$0xff]
        %v467 = vld [vmem:[%s3] sm:$0x1]
        %v469 = vperm.slane %v467, 0
        %471 = vmatpush.msra.mxu0 %v466
        %472 = vmatpush.msra.mxu0 %v465
        %473 = vmatpush.msra.mxu0 %v464
        %474 = vmatpush.msra.mxu0 %v463
        %475 = vmatpush.msra.mxu0 %v462
        %476 = vmatpush.msra.mxu0 %v461
        %477 = vmatpush.msra.mxu0 %v460
        %478 = vmatpush.msra.mxu0 %v459
        %479 = vmatpush.msra.mxu0 %v458
        %480 = vmatpush.msra.mxu0 %v457
        %481 = vmatpush.msra.mxu0 %v456
        %482 = vmatpush.msra.mxu0 %v455
        %483 = vmatpush.msra.mxu0 %v454
        %484 = vmatpush.msra.mxu0 %v453
        %485 = vmatpush.msra.mxu0 %v452
        %486 = vmatpush.msra.mxu0 %v451
        %487 = vmatmul.f32.gmra.mxu0 %v435
        %v488 = vpop.f32.mrf.mxu0
        %v489 = vadd.f32 %v469, %v488
        %490 = vmatmul.f32.gmra.mxu0 %v436
        %v491 = vpop.f32.mrf.mxu0
        %v492 = vadd.f32 %v469, %v491
        %493 = vmatmul.f32.gmra.mxu0 %v437
        %v494 = vpop.f32.mrf.mxu0
        %v495 = vadd.f32 %v469, %v494
        %496 = vmatmul.f32.gmra.mxu0 %v438
        %v497 = vpop.f32.mrf.mxu0
        %v498 = vadd.f32 %v469, %v497
        %499 = vmatmul.f32.gmra.mxu0 %v439
        %v500 = vpop.f32.mrf.mxu0
        %v501 = vadd.f32 %v469, %v500
        %502 = vmatmul.f32.gmra.mxu0 %v440
        %v503 = vpop.f32.mrf.mxu0
        %v504 = vadd.f32 %v469, %v503
        %505 = vmatmul.f32.gmra.mxu0 %v441
        %v506 = vpop.f32.mrf.mxu0
        %v507 = vadd.f32 %v469, %v506
        %508 = vmatmul.f32.gmra.mxu0 %v442
        %v509 = vpop.f32.mrf.mxu0
        %v510 = vadd.f32 %v469, %v509
        %511 = vmatmul.f32.gmra.mxu0 %v443
        %v512 = vpop.f32.mrf.mxu0
        %v513 = vadd.f32 %v469, %v512
        %514 = vmatmul.f32.gmra.mxu0 %v444
        %v515 = vpop.f32.mrf.mxu0
        %v516 = vadd.f32 %v469, %v515
        %517 = vmatmul.f32.gmra.mxu0 %v445
        %v518 = vpop.f32.mrf.mxu0
        %v519 = vadd.f32 %v469, %v518
        %520 = vmatmul.f32.gmra.mxu0 %v446
        %v521 = vpop.f32.mrf.mxu0
        %v522 = vadd.f32 %v469, %v521
        %523 = vmatmul.f32.gmra.mxu0 %v447
        %v524 = vpop.f32.mrf.mxu0
        %v525 = vadd.f32 %v469, %v524
        %526 = vmatmul.f32.gmra.mxu0 %v448
        %v527 = vpop.f32.mrf.mxu0
        %v528 = vadd.f32 %v469, %v527
        %529 = vmatmul.f32.gmra.mxu0 %v449
        %v530 = vpop.f32.mrf.mxu0
        %v531 = vadd.f32 %v469, %v530
        %532 = vmatmul.f32.gmra.mxu0 %v450
        %v533 = vpop.f32.mrf.mxu0
        %v534 = vadd.f32 %v469, %v533
        %535 = vdwg.mxu0
        %v536 = vmax.f32 %v489, 0.0
        %v537 = vmax.f32 %v492, 0.0
        %v538 = vmax.f32 %v495, 0.0
        %v539 = vmax.f32 %v498, 0.0
        %v540 = vmax.f32 %v501, 0.0
        %v541 = vmax.f32 %v504, 0.0
        %v542 = vmax.f32 %v507, 0.0
        %v543 = vmax.f32 %v510, 0.0
        %v544 = vmax.f32 %v513, 0.0
        %v545 = vmax.f32 %v516, 0.0
        %v546 = vmax.f32 %v519, 0.0
        %v547 = vmax.f32 %v522, 0.0
        %v548 = vmax.f32 %v525, 0.0
        %v549 = vmax.f32 %v528, 0.0
        %v550 = vmax.f32 %v531, 0.0
        %v551 = vmax.f32 %v534, 0.0
        %v552 = vld [vmem:[#allocation8] sm:$0xff]
        %v553 = vld [vmem:[#allocation8 + $0x8] sm:$0xff]
        %v554 = vld [vmem:[#allocation8 + $0x10] sm:$0xff]
        %v555 = vld [vmem:[#allocation8 + $0x18] sm:$0xff]
        %v556 = vld [vmem:[#allocation8 + $0x20] sm:$0xff]
        %v557 = vld [vmem:[#allocation8 + $0x28] sm:$0xff]
        %v558 = vld [vmem:[#allocation8 + $0x30] sm:$0xff]
        %v559 = vld [vmem:[#allocation8 + $0x38] sm:$0xff]
        %v560 = vld [vmem:[#allocation8 + $0x40] sm:$0xff]
        %v561 = vld [vmem:[#allocation8 + $0x48] sm:$0xff]
        %v562 = vld [vmem:[#allocation8 + $0x50] sm:$0xff]
        %v563 = vld [vmem:[#allocation8 + $0x58] sm:$0xff]
        %v564 = vld [vmem:[#allocation8 + $0x60] sm:$0xff]
        %v565 = vld [vmem:[#allocation8 + $0x68] sm:$0xff]
        %v566 = vld [vmem:[#allocation8 + $0x70] sm:$0xff]
        %v567 = vld [vmem:[#allocation8 + $0x78] sm:$0xff]
        %v568 = vld [vmem:[%s5] sm:$0x1]
        %v570 = vperm.slane %v568, 0
        %572 = vmatpush.msra.mxu0 %v567
        %573 = vmatpush.msra.mxu0 %v566
        %574 = vmatpush.msra.mxu0 %v565
        %575 = vmatpush.msra.mxu0 %v564
        %576 = vmatpush.msra.mxu0 %v563
        %577 = vmatpush.msra.mxu0 %v562
        %578 = vmatpush.msra.mxu0 %v561
        %579 = vmatpush.msra.mxu0 %v560
        %580 = vmatpush.msra.mxu0 %v559
        %581 = vmatpush.msra.mxu0 %v558
        %582 = vmatpush.msra.mxu0 %v557
        %583 = vmatpush.msra.mxu0 %v556
        %584 = vmatpush.msra.mxu0 %v555
        %585 = vmatpush.msra.mxu0 %v554
        %586 = vmatpush.msra.mxu0 %v553
        %587 = vmatpush.msra.mxu0 %v552
        %588 = vmatmul.f32.gmra.mxu0 %v536
        %v589 = vpop.f32.mrf.mxu0
        %v590 = vadd.f32 %v570, %v589
        %591 = vmatmul.f32.gmra.mxu0 %v537
        %v592 = vpop.f32.mrf.mxu0
        %v593 = vadd.f32 %v570, %v592
        %594 = vmatmul.f32.gmra.mxu0 %v538
        %v595 = vpop.f32.mrf.mxu0
        %v596 = vadd.f32 %v570, %v595
        %597 = vmatmul.f32.gmra.mxu0 %v539
        %v598 = vpop.f32.mrf.mxu0
        %v599 = vadd.f32 %v570, %v598
        %600 = vmatmul.f32.gmra.mxu0 %v540
        %v601 = vpop.f32.mrf.mxu0
        %v602 = vadd.f32 %v570, %v601
        %603 = vmatmul.f32.gmra.mxu0 %v541
        %v604 = vpop.f32.mrf.mxu0
        %v605 = vadd.f32 %v570, %v604
        %606 = vmatmul.f32.gmra.mxu0 %v542
        %v607 = vpop.f32.mrf.mxu0
        %v608 = vadd.f32 %v570, %v607
        %609 = vmatmul.f32.gmra.mxu0 %v543
        %v610 = vpop.f32.mrf.mxu0
        %v611 = vadd.f32 %v570, %v610
        %612 = vmatmul.f32.gmra.mxu0 %v544
        %v613 = vpop.f32.mrf.mxu0
        %v614 = vadd.f32 %v570, %v613
        %615 = vmatmul.f32.gmra.mxu0 %v545
        %v616 = vpop.f32.mrf.mxu0
        %v617 = vadd.f32 %v570, %v616
        %618 = vmatmul.f32.gmra.mxu0 %v546
        %v619 = vpop.f32.mrf.mxu0
        %v620 = vadd.f32 %v570, %v619
        %621 = vmatmul.f32.gmra.mxu0 %v547
        %v622 = vpop.f32.mrf.mxu0
        %v623 = vadd.f32 %v570, %v622
        %624 = vmatmul.f32.gmra.mxu0 %v548
        %v625 = vpop.f32.mrf.mxu0
        %v626 = vadd.f32 %v570, %v625
        %627 = vmatmul.f32.gmra.mxu0 %v549
        %v628 = vpop.f32.mrf.mxu0
        %v629 = vadd.f32 %v570, %v628
        %630 = vmatmul.f32.gmra.mxu0 %v550
        %v631 = vpop.f32.mrf.mxu0
        %v632 = vadd.f32 %v570, %v631
        %633 = vmatmul.f32.gmra.mxu0 %v551
        %v634 = vpop.f32.mrf.mxu0
        %v635 = vadd.f32 %v570, %v634
        %636 = vdwg.mxu0
        %v637 = vmax.f32 %v590, 0.0
        %v638 = vmax.f32 %v593, 0.0
        %v639 = vmax.f32 %v596, 0.0
        %v640 = vmax.f32 %v599, 0.0
        %v641 = vmax.f32 %v602, 0.0
        %v642 = vmax.f32 %v605, 0.0
        %v643 = vmax.f32 %v608, 0.0
        %v644 = vmax.f32 %v611, 0.0
        %v645 = vmax.f32 %v614, 0.0
        %v646 = vmax.f32 %v617, 0.0
        %v647 = vmax.f32 %v620, 0.0
        %v648 = vmax.f32 %v623, 0.0
        %v649 = vmax.f32 %v626, 0.0
        %v650 = vmax.f32 %v629, 0.0
        %v651 = vmax.f32 %v632, 0.0
        %v652 = vmax.f32 %v635, 0.0
        %v653 = vld [vmem:[%s6] sm:$0xf]
        %v654 = vld [vmem:[%s7] sm:$0xf]
        %656 = vset.pattern.permute.xlu0 0
        %657 = vperm.xlu0 %656, %v654
        %v658 = vpop.permute.xlu0 %657
        %660 = vmatpush.xpose.msra.mxu0 %v652
        %661 = vmatpush.xpose.msra.mxu0 %v651
        %662 = vmatpush.xpose.msra.mxu0 %v650
        %663 = vmatpush.xpose.msra.mxu0 %v649
        %664 = vmatpush.xpose.msra.mxu0 %v648
        %665 = vmatpush.xpose.msra.mxu0 %v647
        %666 = vmatpush.xpose.msra.mxu0 %v646
        %667 = vmatpush.xpose.msra.mxu0 %v645
        %668 = vmatpush.xpose.msra.mxu0 %v644
        %669 = vmatpush.xpose.msra.mxu0 %v643
        %670 = vmatpush.xpose.msra.mxu0 %v642
        %671 = vmatpush.xpose.msra.mxu0 %v641
        %672 = vmatpush.xpose.msra.mxu0 %v640
        %673 = vmatpush.xpose.msra.mxu0 %v639
        %674 = vmatpush.xpose.msra.mxu0 %v638
        %675 = vmatpush.xpose.msra.mxu0 %v637
        %676 = vmatmul.f32.gmra.mxu0 %v653
        %v677 = vpop.f32.mrf.mxu0
        %v678 = vadd.f32 %v658, %v677
        %679 = vdwg.mxu0
        %680 = vst [vmem:[%s400] sm:$0xf] %v678
        %s681 = sand.u32 %s215, 1
        %s682 = scalar_lea.sflag [#allocation4], %s681
        %s683 = sand.u32 %s215, 1
        %s684 = smul.addr %s683, 4
        %s685 = scalar_lea.vmem [#allocation10], %s684
        // Predicated region
        $region69: #{tpu_custom_call.1} parent=51 // pred_check
          %p686 = pneg %p225
        $region70: #{tpu_custom_call.1} parent=51 // pred_check_branch
          %688 = sbr.rel (%p686) target = $region72
        $region71: #{tpu_custom_call.1} parent=51 // pred_region
          %690 = vsyncadd %s682, 0
          %s691 = smul.addr %s29, 4
          %s692 = scalar_lea.hbm %s8, %s691
          %s694 = sshll.u32 %s685, 4
          %s695 = int_to_ptr.vmem [resolvable:$true] %s694
          %s696 = sshll.u32 %s692, 4
          %s697 = int_to_ptr.hbm [resolvable:$true] %s696
          %699 = dma.vmem_to_hbm [thread:$0]  %s695, 64, %s697, %s682
        $region72: #{tpu_custom_call.1} parent=51 // pred_fallthru
          _
      $region52: #{tpu_custom_call.1} parent=5 // pred_fallthru
        _
      %p700 = scmp.le.s32.totalorder 2, %s24
      // Predicated region
      $region73: #{tpu_custom_call.1} parent=5 // pred_check
        %p701 = pneg %p700
      $region74: #{tpu_custom_call.1} parent=5 // pred_check_branch
        %703 = sbr.rel (%p701) target = $region76
      $region75: #{tpu_custom_call.1} parent=5 // pred_region
        %s704 = ssub.s32 %s24, 2
        // Predicated region
        $region77: #{tpu_custom_call.1} parent=75 // pred_check
          %p705 = pneg %p231
        $region78: #{tpu_custom_call.1} parent=75 // pred_check_branch
          %707 = sbr.rel (%p705) target = $region80
        $region79: #{tpu_custom_call.1} parent=75 // pred_region
          %s708 = sand.u32 %s216, 1
          %s709 = scalar_lea.sflag [#allocation4], %s708
          %s710 = sand.u32 %s216, 1
          %s711 = smul.addr %s710, 4
          %s712 = scalar_lea.vmem [#allocation10], %s711
          %714 = dma.done %s709, 64
        $region80: #{tpu_custom_call.1} parent=75 // pred_fallthru
          _
      $region76: #{tpu_custom_call.1} parent=5 // pred_fallthru
        _
    $region6: #{tpu_custom_call.1} parent=1 // loop_footer
      %s28 = sadd.s32 1, %s24
    $region7: #{tpu_custom_call.1} parent=1 // loop_footer_branch
      %23 = sbr.rel target = $region3
    $region8: #{tpu_custom_call.1} parent=1 // loop_exit
      _
    %715 = vsyncpa [#allocation3], 1
    %s716 = scalar_lea.sflag [#allocation3], 1
    %717 = vsyncpa %s716, 1
    %718 = vsyncpa [#allocation6], 1
    %s719 = scalar_lea.sflag [#allocation6], 1
    %720 = vsyncpa %s719, 1
    %721 = vsyncpa [#allocation9], 1
    %722 = vsyncpa [#allocation4], 1
    %s723 = scalar_lea.sflag [#allocation4], 1
    %724 = vsyncpa %s723, 1

</llo_original>
